<compile_context>
chip_gen: v7x
topology: tpu7x:2x2x1
jax: 0.10.0
libtpu: 0.0.40
codegen_flags: <defaults>
</compile_context>

<pallas_src>
import functools

import jax
import jax.numpy as jnp
from jax.experimental import pallas as pl
from jax.experimental.pallas import tpu as pltpu


def _round_up(x, m):
    return (x + m - 1) // m * m


def _fpn_predictor_kernel(pc, x_ref, w_ref, b_ref, scores_ref, bbox_ref):
    # Single fused MXU matmul: (TN, D) @ (D, Pc+Pb) with f32 accumulation.
    # x arrives in its HBM dtype; the bf16 cast happens in-register (VPU
    # filler) so the wrapper never makes an extra HBM pass over x.
    x = x_ref[...].astype(w_ref.dtype)
    acc = jnp.dot(x, w_ref[...], preferred_element_type=jnp.float32)
    acc = acc + b_ref[...]  # bias add in f32
    # 128-aligned static slices of the f32 accumulator are free (no lane
    # rotate); each head goes to its own lane-dense output slab.
    scores_ref[...] = acc[:, :pc].astype(scores_ref.dtype)
    bbox_ref[...] = acc[:, pc:].astype(bbox_ref.dtype)


def prepare_fpn_predictor_params(w_cls, b_cls, w_bbox, b_bbox,
                                 compute_dtype=jnp.bfloat16):
    """One-time prep: transpose and fuse the two Linear layers.

    PyTorch Linear layout in: w_cls (C, D), b_cls (C,), w_bbox (B, D),
    b_bbox (B,).  The cls head occupies fused columns [0, C) (padded to
    Pc = round_up(C, 128)); the bbox head occupies [Pc, Pc + B) (padded to
    Pc + Pb, Pb = round_up(B, 128)).  Padded columns are exactly zero and
    are trimmed off by the wrapper.
    Returns (w_fused (D, Pc+Pb) compute_dtype, b_fused (1, Pc+Pb) f32, C, B).
    """
    C, D = w_cls.shape
    B = w_bbox.shape[0]
    Pc = _round_up(C, 128)
    Pb = _round_up(B, 128)
    P = Pc + Pb

    w_fused = jnp.zeros((D, P), jnp.float32)
    w_fused = w_fused.at[:, :C].set(jnp.transpose(w_cls).astype(jnp.float32))
    w_fused = w_fused.at[:, Pc:Pc + B].set(
        jnp.transpose(w_bbox).astype(jnp.float32))
    w_fused = w_fused.astype(compute_dtype)

    b_fused = jnp.zeros((1, P), jnp.float32)
    b_fused = b_fused.at[0, :C].set(b_cls.astype(jnp.float32))
    b_fused = b_fused.at[0, Pc:Pc + B].set(b_bbox.astype(jnp.float32))
    return w_fused, b_fused, C, B


@functools.partial(jax.jit, static_argnames=("num_cls", "num_bbox", "tile_n"))
def fpn_predictor(x, w_fused, b_fused, num_cls, num_bbox, tile_n=1024):
    """Forward pass of FPNPredictor.

    x: (N, D) or (N, D, 1, 1) in its native dtype (no wrapper cast).
    w_fused/b_fused from prepare_fpn_predictor_params.
    Returns (scores (N, num_cls), bbox_deltas (N, num_bbox)) in f32.
    """
    if x.ndim == 4:
        assert x.shape[2] == 1 and x.shape[3] == 1
        x = x.reshape(x.shape[0], -1)
    N, D = x.shape
    Pc = _round_up(num_cls, 128)
    Pb = _round_up(num_bbox, 128)
    P = Pc + Pb
    assert w_fused.shape == (D, P) and b_fused.shape == (1, P)

    # N tiling: big tiles (amortize ~0.35us/step), multiple of 16 sublanes,
    # capped near N/2 so the grid keeps >=2 parallel steps for v7x's 2 TCs.
    # No wrapper padding: pl.cdiv grid + masked partial last block.
    tn = min(_round_up(tile_n, 16), max(16, _round_up(pl.cdiv(N, 2), 16)))
    if tn >= N:
        tn = N  # tiny N: one exact block
    grid = (pl.cdiv(N, tn),)

    x_itemsize = jnp.dtype(x.dtype).itemsize
    w_itemsize = jnp.dtype(w_fused.dtype).itemsize
    cost = pl.CostEstimate(
        flops=2 * N * D * P,
        transcendentals=0,
        bytes_accessed=(N * D * x_itemsize + D * P * w_itemsize + P * 4
                        + N * Pc * 4 + N * Pb * 4),
    )

    # VMEM budget: double-buffered x/out tiles + single-buffered weight/bias.
    est_vmem = (2 * tn * D * x_itemsize
                + D * P * w_itemsize + P * 4
                + 2 * tn * (Pc + Pb) * 4)
    vmem_limit = min(64 * 1024 * 1024, max(32 * 1024 * 1024, 2 * est_vmem))

    kernel = functools.partial(_fpn_predictor_kernel, Pc)
    scores_p, bbox_p = pl.pallas_call(
        kernel,
        out_shape=(jax.ShapeDtypeStruct((N, Pc), jnp.float32),
                   jax.ShapeDtypeStruct((N, Pb), jnp.float32)),
        grid=grid,
        in_specs=[
            # x tile: pipelined along the N grid axis.
            pl.BlockSpec((tn, D), lambda i: (i, 0)),
            # Fused weight / bias: constant index_map -> VMEM-resident,
            # single-buffered so they don't pay for a second in-flight copy.
            pl.BlockSpec((D, P), lambda i: (0, 0),
                         pipeline_mode=pl.Buffered(1)),
            pl.BlockSpec((1, P), lambda i: (0, 0),
                         pipeline_mode=pl.Buffered(1)),
        ],
        out_specs=[
            pl.BlockSpec((tn, Pc), lambda i: (i, 0)),
            pl.BlockSpec((tn, Pb), lambda i: (i, 0)),
        ],
        compiler_params=pltpu.CompilerParams(
            dimension_semantics=("parallel",),
            vmem_limit_bytes=vmem_limit),
        cost_estimate=cost,
    )(x, w_fused, b_fused)

    # Only lane-trim from column 0 (no unaligned offset, no fused-slab
    # re-read). Padded lanes are exact zeros; never consume them unsliced.
    scores = scores_p[:, :num_cls]
    bbox_deltas = bbox_p[:, :num_bbox]
    return scores, bbox_deltas


def init_fpn_predictor_params(key, in_channels, num_classes,
                              cls_agnostic_bbox_reg=False,
                              dtype=jnp.float32):
    """Deterministic param init matching FPNPredictor.__init__
    (PyTorch Linear layout: (out, in) weights, zero biases)."""
    num_bbox_reg_classes = 2 if cls_agnostic_bbox_reg else num_classes
    k1, k2 = jax.random.split(key)
    w_cls = 0.01 * jax.random.normal(k1, (num_classes, in_channels), dtype)
    b_cls = jnp.zeros((num_classes,), dtype)
    w_bbox = 0.001 * jax.random.normal(
        k2, (num_bbox_reg_classes * 4, in_channels), dtype)
    b_bbox = jnp.zeros((num_bbox_reg_classes * 4,), dtype)
    return w_cls, b_cls, w_bbox, b_bbox


if __name__ == "__main__":
    # Small synthetic config: 200 ROIs (NOT a multiple of the N-tile, so the
    # multi-step grid and the masked partial last block are exercised),
    # representation size 128, 8 classes, class-specific bbox regression
    # (8 * 4 = 32 bbox outputs).
    N = 200
    in_channels = 128
    num_classes = 8

    key = jax.random.PRNGKey(0)
    kx, kp, kb1, kb2 = jax.random.split(key, 4)
    # Input as (N, C, 1, 1), like the pooled-feature path of the box head.
    x = jax.random.normal(kx, (N, in_channels, 1, 1), jnp.float32)

    w_cls, b_cls, w_bbox, b_bbox = init_fpn_predictor_params(
        kp, in_channels, num_classes, cls_agnostic_bbox_reg=False)
    # Module init zeroes the biases; use small non-zero biases here so the
    # fused bias-add and head-offset layout are exercised numerically.
    b_cls = 0.05 * jax.random.normal(kb1, b_cls.shape, jnp.float32)
    b_bbox = 0.05 * jax.random.normal(kb2, b_bbox.shape, jnp.float32)

    # One-time param prep (transpose + fuse + 128-lane-align + bf16 cast).
    w_fused, b_fused, C, B = prepare_fpn_predictor_params(
        w_cls, b_cls, w_bbox, b_bbox)

    scores, bbox_deltas = fpn_predictor(x, w_fused, b_fused, C, B)
    jax.block_until_ready((scores, bbox_deltas))

    # Reference in plain JAX using the same bf16-rounded operands (f32 math),
    # so any difference comes only from accumulation order.
    x2 = x.reshape(N, -1)
    x2_bf = x2.astype(jnp.bfloat16).astype(jnp.float32)
    wc_bf = w_cls.astype(jnp.bfloat16).astype(jnp.float32)
    wb_bf = w_bbox.astype(jnp.bfloat16).astype(jnp.float32)
    scores_ref = x2_bf @ wc_bf.T + b_cls
    bbox_ref = x2_bf @ wb_bf.T + b_bbox
    # Full-precision reference for a looser sanity check.
    scores_f32 = x2 @ w_cls.T + b_cls
    bbox_f32 = x2 @ w_bbox.T + b_bbox

    assert scores.shape == (N, num_classes)
    assert bbox_deltas.shape == (N, num_classes * 4)
    assert jnp.allclose(scores, scores_ref, atol=1e-4, rtol=1e-4)
    assert jnp.allclose(bbox_deltas, bbox_ref, atol=1e-4, rtol=1e-4)
    assert jnp.allclose(scores, scores_f32, atol=1e-2, rtol=1e-2)
    assert jnp.allclose(bbox_deltas, bbox_f32, atol=1e-2, rtol=1e-2)

    print("KERNEL_OK")
</pallas_src>

<mosaic_0001>
module attributes {stable_mosaic.version = 11 : i64} {
  func.func @_fpn_predictor_kernel(%arg0: i32, %arg1: memref<112x128xf32, #tpu.memory_space<vmem>>, %arg2: memref<128x256xbf16, #tpu.memory_space<vmem>>, %arg3: memref<1x256xf32, #tpu.memory_space<vmem>>, %arg4: memref<112x128xf32, #tpu.memory_space<vmem>>, %arg5: memref<112x128xf32, #tpu.memory_space<vmem>>) attributes {dimension_semantics = [#tpu.dimension_semantics<parallel>], iteration_bounds = array<i64: 2>, scalar_prefetch = 0 : i64, scratch_operands = 0 : i64, tpu.core_type = #tpu.core_type<tc>, window_params = [{transform_indices = @transform_0, window_bounds = array<i64: 112, 128>}, {pipeline_mode = #tpu.pipeline_mode<synchronous>, transform_indices = @transform_1, window_bounds = array<i64: 128, 256>}, {pipeline_mode = #tpu.pipeline_mode<synchronous>, transform_indices = @transform_2, window_bounds = array<i64: 1, 256>}, {transform_indices = @transform_3, window_bounds = array<i64: 112, 128>}, {transform_indices = @transform_4, window_bounds = array<i64: 112, 128>}]} {
    %c0 = arith.constant 0 : index
    %c0_0 = arith.constant 0 : index
    %0 = vector.load %arg1[%c0, %c0_0] : memref<112x128xf32, #tpu.memory_space<vmem>>, vector<112x128xf32>
    %1 = arith.truncf %0 : vector<112x128xf32> to vector<112x128xbf16>
    %c0_1 = arith.constant 0 : index
    %c0_2 = arith.constant 0 : index
    %2 = vector.load %arg2[%c0_1, %c0_2] : memref<128x256xbf16, #tpu.memory_space<vmem>>, vector<128x256xbf16>
    %cst = arith.constant dense<0.000000e+00> : vector<112x256xf32>
    %3 = tpu.matmul %1, %2, %cst {dimension_numbers = #tpu.dot_dimension_numbers<[1], [0], [0], [1], [0, 0, 1, 1], [], []>} : vector<112x128xbf16>, vector<128x256xbf16>, vector<112x256xf32> -> vector<112x256xf32>
    %c0_3 = arith.constant 0 : index
    %c0_4 = arith.constant 0 : index
    %4 = vector.load %arg3[%c0_3, %c0_4] : memref<1x256xf32, #tpu.memory_space<vmem>>, vector<1x256xf32>
    %5 = vector.broadcast %4 : vector<1x256xf32> to vector<112x256xf32>
    %6 = arith.addf %3, %5 : vector<112x256xf32>
    %7 = vector.extract_strided_slice %6 {offsets = [0, 0], sizes = [112, 128], strides = [1, 1]} : vector<112x256xf32> to vector<112x128xf32>
    %c0_5 = arith.constant 0 : index
    %c0_6 = arith.constant 0 : index
    %8 = vector.load %arg4[%c0_5, %c0_6] : memref<112x128xf32, #tpu.memory_space<vmem>>, vector<112x128xf32>
    tpu.vector_store %arg4[%c0_5, %c0_6], %7 {strides = array<i32>} : memref<112x128xf32, #tpu.memory_space<vmem>>, vector<112x128xf32>,
    %9 = vector.extract_strided_slice %6 {offsets = [0, 128], sizes = [112, 128], strides = [1, 1]} : vector<112x256xf32> to vector<112x128xf32>
    %c0_7 = arith.constant 0 : index
    %c0_8 = arith.constant 0 : index
    %10 = vector.load %arg5[%c0_7, %c0_8] : memref<112x128xf32, #tpu.memory_space<vmem>>, vector<112x128xf32>
    tpu.vector_store %arg5[%c0_7, %c0_8], %9 {strides = array<i32>} : memref<112x128xf32, #tpu.memory_space<vmem>>, vector<112x128xf32>,
    return
  }
  func.func @transform_0(%arg0: i32) -> (i32, i32) {
    %c0_i32 = arith.constant 0 : i32
    %c0_i32_0 = arith.constant 0 : i32
    return %arg0, %c0_i32 : i32, i32
  }
  func.func @transform_1(%arg0: i32) -> (i32, i32) {
    %c0_i32 = arith.constant 0 : i32
    %c0_i32_0 = arith.constant 0 : i32
    %c0_i32_1 = arith.constant 0 : i32
    return %c0_i32, %c0_i32_0 : i32, i32
  }
  func.func @transform_2(%arg0: i32) -> (i32, i32) {
    %c0_i32 = arith.constant 0 : i32
    %c0_i32_0 = arith.constant 0 : i32
    %c0_i32_1 = arith.constant 0 : i32
    return %c0_i32, %c0_i32_0 : i32, i32
  }
  func.func @transform_3(%arg0: i32) -> (i32, i32) {
    %c0_i32 = arith.constant 0 : i32
    %c0_i32_0 = arith.constant 0 : i32
    return %arg0, %c0_i32 : i32, i32
  }
  func.func @transform_4(%arg0: i32) -> (i32, i32) {
    %c0_i32 = arith.constant 0 : i32
    %c0_i32_0 = arith.constant 0 : i32
    return %arg0, %c0_i32 : i32, i32
  }
}

</mosaic_0001>

<llo_original>
// kernel: fpn_predictor.1
$region0: #{fpn_predictor.1}
  #allocation0 [shape = 'u32[]', space=smem, size = 0x4, offset = 0x4, fixed_abs, tag = 'smem constant byte address 0x4 - core index']
  #allocation1 [shape = 'u32[144,128]{1,0:T(1,128)}', space=vmem, size = 0x12000, scoped, tag = 'internal scratch']
  %s0 = inlined_call_operand.hbm [shape: f32[200,128], index: 0, kind: input, shape index: {}]
  %s1 = inlined_call_operand.hbm [shape: bf16[128,256], index: 1, kind: input, shape index: {}]
  %s2 = inlined_call_operand.vmem [shape: f32[1,256], index: 2, kind: input, shape index: {}]
  %s3 = inlined_call_operand.vmem [shape: f32[200,128], index: 3, kind: output, shape index: {0}]
  %s4 = inlined_call_operand.vmem [shape: f32[200,128], index: 4, kind: output, shape index: {1}]
  %5 = xla_tuple %s3, %s4
  %s6 = sld [smem:[#allocation0]]
  $region157: #{fpn_predictor.1} parent=0
    _
  %s8 = ssub.s32 1, %s6
  %s9 = scalar_select 0, %s8, %s6
  $region1: #{fpn_predictor.1} parent=0
    #allocation2 [shape = 'u8[114688]{0}', space=vmem, size = 0x1c000, scoped, tag = 'input window, operand 0']
    #allocation3 [shape = 's32[2]{0}', space=sflag, size = 0x8, scoped, tag = 'scoped memory for fpn_predictor.1']
    #allocation4 [shape = 'u8[65536]{0}', space=vmem, size = 0x10000, scoped, tag = 'input window, operand 1, single buffered']
    #allocation5 [shape = 's32[1]{0}', space=sflag, size = 0x4, scoped, tag = 'scoped memory for fpn_predictor.1']
    #allocation6 [shape = 'u8[114688]{0}', space=vmem, size = 0x1c000, scoped, tag = 'output window, operand 0']
    #allocation7 [shape = 'u8[114688]{0}', space=vmem, size = 0x1c000, scoped, tag = 'output window, operand 1']
    %10 = vsyncpa [#allocation3], 0
    %s11 = scalar_lea.sflag [#allocation3], 1
    %12 = vsyncpa %s11, 0
    %13 = vsyncpa [#allocation5], 0
    loop: start=0, step=1, limit=4
    $region2: #{fpn_predictor.1} parent=1 // loop_pre_header
      _
    $region3: #{fpn_predictor.1} parent=1 // loop_header
      %s15 = sphi 0, %s19
      %p16 = scmp.ge.s32.totalorder %s15, 4
      %s25 = sphi 0, %s27
      %s28 = sphi 0, %s25
      %s29 = sphi 0, %s28
      %s45 = sphi 0, %s29
      %s49 = sphi 0, %s49
      %s51 = sphi 0, %s49
      %s52 = sphi 0, %s51
      %s66 = sphi 0, %s52
      %s70 = sphi 0, %s70
      %s72 = sphi 0, %s70
      %s73 = sphi 0, %s72
      %s87 = sphi 0, %s73
      %s93 = sphi 0, %s95
      %s96 = sphi 0, %s93
      %s97 = sphi 0, %s96
      %s113 = sphi 0, %s97
      %s119 = sphi 0, %s121
      %s122 = sphi 0, %s119
      %s123 = sphi 0, %s122
      %s139 = sphi 0, %s123
    $region4: #{fpn_predictor.1} parent=1 // loop_header_branch
      %18 = sbr.rel (%p16) target = $region8
    $region5: #{fpn_predictor.1} parent=1 // loop_body
      %s20 = ssub.s32 %s15, 1
      %s21 = ssub.s32 %s15, 2
      %s22 = sadd.s32 %s15, 1
      %s23 = ssub.s32 %s15, %s22
      %p24 = scmp.eq.s32.totalorder %s23, 0
      %s26 = sadd.s32 %s25, 1
      %s27 = scalar_select %p24, %s25, %s26
      %p30 = pneg %p24
      %p31 = scmp.eq.s32.totalorder %s15, 1
      %p32 = por %p30, %p31
      %p33 = scmp.ne.s32.totalorder %s25, %s28
      %p34 = scmp.eq.s32.totalorder %s15, 0
      %p35 = por %p33, %p34
      %p36 = scmp.ne.s32.totalorder %s25, %s28
      %p37 = scmp.eq.s32.totalorder %s20, 1
      %p38 = por %p36, %p37
      %p39 = scmp.ne.s32.totalorder %s28, %s29
      %p40 = scmp.eq.s32.totalorder %s20, 0
      %p41 = por %p39, %p40
      %p42 = scmp.ne.s32.totalorder %s28, %s29
      %p43 = scmp.eq.s32.totalorder %s21, 1
      %p44 = por %p42, %p43
      %p46 = scmp.ne.s32.totalorder %s29, %s45
      %p47 = scmp.eq.s32.totalorder %s21, 0
      %p48 = por %p46, %p47
      %s50 = sadd.s32 %s49, 1
      %p53 = scmp.eq.s32.totalorder %s15, 1
      %p54 = scmp.ne.s32.totalorder %s49, %s51
      %p55 = scmp.eq.s32.totalorder %s15, 0
      %p56 = por %p54, %p55
      %p57 = scmp.ne.s32.totalorder %s49, %s51
      %p58 = scmp.eq.s32.totalorder %s20, 1
      %p59 = por %p57, %p58
      %p60 = scmp.ne.s32.totalorder %s51, %s52
      %p61 = scmp.eq.s32.totalorder %s20, 0
      %p62 = por %p60, %p61
      %p63 = scmp.ne.s32.totalorder %s51, %s52
      %p64 = scmp.eq.s32.totalorder %s21, 1
      %p65 = por %p63, %p64
      %p67 = scmp.ne.s32.totalorder %s52, %s66
      %p68 = scmp.eq.s32.totalorder %s21, 0
      %p69 = por %p67, %p68
      %s71 = sadd.s32 %s70, 1
      %p74 = scmp.eq.s32.totalorder %s15, 1
      %p75 = scmp.ne.s32.totalorder %s70, %s72
      %p76 = scmp.eq.s32.totalorder %s15, 0
      %p77 = por %p75, %p76
      %p78 = scmp.ne.s32.totalorder %s70, %s72
      %p79 = scmp.eq.s32.totalorder %s20, 1
      %p80 = por %p78, %p79
      %p81 = scmp.ne.s32.totalorder %s72, %s73
      %p82 = scmp.eq.s32.totalorder %s20, 0
      %p83 = por %p81, %p82
      %p84 = scmp.ne.s32.totalorder %s72, %s73
      %p85 = scmp.eq.s32.totalorder %s21, 1
      %p86 = por %p84, %p85
      %p88 = scmp.ne.s32.totalorder %s73, %s87
      %p89 = scmp.eq.s32.totalorder %s21, 0
      %p90 = por %p88, %p89
      %s91 = ssub.s32 %s15, %s22
      %p92 = scmp.eq.s32.totalorder %s91, 0
      %s94 = sadd.s32 %s93, 1
      %s95 = scalar_select %p92, %s93, %s94
      %p98 = pneg %p92
      %p99 = scmp.eq.s32.totalorder %s15, 1
      %p100 = por %p98, %p99
      %p101 = scmp.ne.s32.totalorder %s93, %s96
      %p102 = scmp.eq.s32.totalorder %s15, 0
      %p103 = por %p101, %p102
      %p104 = scmp.ne.s32.totalorder %s93, %s96
      %p105 = scmp.eq.s32.totalorder %s20, 1
      %p106 = por %p104, %p105
      %p107 = scmp.ne.s32.totalorder %s96, %s97
      %p108 = scmp.eq.s32.totalorder %s20, 0
      %p109 = por %p107, %p108
      %p110 = scmp.ne.s32.totalorder %s96, %s97
      %p111 = scmp.eq.s32.totalorder %s21, 1
      %p112 = por %p110, %p111
      %p114 = scmp.ne.s32.totalorder %s97, %s113
      %p115 = scmp.eq.s32.totalorder %s21, 0
      %p116 = por %p114, %p115
      %s117 = ssub.s32 %s15, %s22
      %p118 = scmp.eq.s32.totalorder %s117, 0
      %s120 = sadd.s32 %s119, 1
      %s121 = scalar_select %p118, %s119, %s120
      %p124 = pneg %p118
      %p125 = scmp.eq.s32.totalorder %s15, 1
      %p126 = por %p124, %p125
      %p127 = scmp.ne.s32.totalorder %s119, %s122
      %p128 = scmp.eq.s32.totalorder %s15, 0
      %p129 = por %p127, %p128
      %p130 = scmp.ne.s32.totalorder %s119, %s122
      %p131 = scmp.eq.s32.totalorder %s20, 1
      %p132 = por %p130, %p131
      %p133 = scmp.ne.s32.totalorder %s122, %s123
      %p134 = scmp.eq.s32.totalorder %s20, 0
      %p135 = por %p133, %p134
      %p136 = scmp.ne.s32.totalorder %s122, %s123
      %p137 = scmp.eq.s32.totalorder %s21, 1
      %p138 = por %p136, %p137
      %p140 = scmp.ne.s32.totalorder %s123, %s139
      %p141 = scmp.eq.s32.totalorder %s21, 0
      %p142 = por %p140, %p141
      %p143 = scmp.le.s32.totalorder 1, %s15
      %p144 = scmp.lt.s32.totalorder %s15, 3
      %p145 = pnand %p143, %p144
      %p146 = pneg %p145
      // Predicated region
      $region9: #{fpn_predictor.1} parent=5 // pred_check
        _
      $region10: #{fpn_predictor.1} parent=5 // pred_check_branch
        %148 = sbr.rel (%p145) target = $region12
      $region11: #{fpn_predictor.1} parent=5 // pred_region
        %s149 = ssub.s32 %s15, 1
        // Predicated region
        $region13: #{fpn_predictor.1} parent=11 // pred_check
          %p150 = pneg %p62
        $region14: #{fpn_predictor.1} parent=11 // pred_check_branch
          %152 = sbr.rel (%p150) target = $region16
        $region15: #{fpn_predictor.1} parent=11 // pred_region
          %s154 = ssub.s32 2048, 2048
          %155 = vsyncadd [#allocation5], %s154
          %s156 = sshll.u32 [#allocation4], 4
          %s157 = int_to_ptr.vmem [resolvable:$true] %s156
          %162 = dma.hbm_to_vmem [thread:$0]  %s1, 2048, %s157, [#allocation5], 128, 128, 8
        $region16: #{fpn_predictor.1} parent=11 // pred_fallthru
          _
        // Predicated region
        $region17: #{fpn_predictor.1} parent=11 // pred_check
          %p163 = pneg %p83
        $region18: #{fpn_predictor.1} parent=11 // pred_check_branch
          %165 = sbr.rel (%p163) target = $region20
        $region19: #{fpn_predictor.1} parent=11 // pred_region
          _
        $region20: #{fpn_predictor.1} parent=11 // pred_fallthru
          _
      $region12: #{fpn_predictor.1} parent=5 // pred_fallthru
        _
      %p166 = scmp.lt.s32.totalorder %s15, 2
      // Predicated region
      $region21: #{fpn_predictor.1} parent=5 // pred_check
        %p167 = pneg %p166
      $region22: #{fpn_predictor.1} parent=5 // pred_check_branch
        %169 = sbr.rel (%p167) target = $region24
      $region23: #{fpn_predictor.1} parent=5 // pred_region
        // Predicated region
        $region25: #{fpn_predictor.1} parent=23 // pred_check
          %p170 = pneg %p35
        $region26: #{fpn_predictor.1} parent=23 // pred_check_branch
          %172 = sbr.rel (%p170) target = $region28
        $region27: #{fpn_predictor.1} parent=23 // pred_region
          %s173 = sand.u32 %s25, 1
          %s174 = scalar_lea.sflag [#allocation3], %s173
          %s175 = sand.u32 %s25, 1
          %s176 = smul.addr %s175, 112
          %s177 = scalar_lea.vmem [#allocation2], %s176
          %s178 = smul.u32 14, %s15
          %s179 = ssub.s32 25, %s178
          %p180 = scmp.lt.s32.totalorder %s179, 14
          %s181 = scalar_select %p180, %s179, 14
          %s182 = smul.u32 128, %s181
          %s184 = ssub.s32 1792, %s182
          %185 = vsyncadd %s174, %s184
          %p186 = scmp.ne.s32.totalorder 0, %s182
          %s187 = smul.addr %s178, 128
          %s188 = scalar_lea.hbm %s0, %s187
          %s189 = smul.u32 8, %s181
          %s190 = sshll.u32 %s177, 4
          %s191 = int_to_ptr.vmem [resolvable:$true] %s190
          %s192 = sshll.u32 %s189, 4
          %196 = dma.hbm_to_vmem [thread:$0]  (%p186), %s188, %s192, %s191, %s174, 128, 128, 8
        $region28: #{fpn_predictor.1} parent=23 // pred_fallthru
          _
      $region24: #{fpn_predictor.1} parent=5 // pred_fallthru
        _
      %p197 = scmp.le.s32.totalorder 1, %s15
      %p198 = scmp.lt.s32.totalorder %s15, 3
      %p199 = pnand %p197, %p198
      %p200 = pneg %p199
      // Predicated region
      $region29: #{fpn_predictor.1} parent=5 // pred_check
        _
      $region30: #{fpn_predictor.1} parent=5 // pred_check_branch
        %202 = sbr.rel (%p199) target = $region32
      $region31: #{fpn_predictor.1} parent=5 // pred_region
        %s203 = ssub.s32 %s15, 1
        %s204 = sand.u32 %s28, 1
        %s205 = scalar_lea.sflag [#allocation3], %s204
        %s206 = sand.u32 %s28, 1
        %s207 = smul.addr %s206, 112
        %s208 = scalar_lea.vmem [#allocation2], %s207
        // Predicated region
        $region33: #{fpn_predictor.1} parent=31 // pred_check
          %p209 = pneg %p41
        $region34: #{fpn_predictor.1} parent=31 // pred_check_branch
          %211 = sbr.rel (%p209) target = $region36
        $region35: #{fpn_predictor.1} parent=31 // pred_region
          %212 = dma.done %s205, 1792
        $region36: #{fpn_predictor.1} parent=31 // pred_fallthru
          _
        // Predicated region
        $region37: #{fpn_predictor.1} parent=31 // pred_check
          %p213 = pneg %p62
        $region38: #{fpn_predictor.1} parent=31 // pred_check_branch
          %215 = sbr.rel (%p213) target = $region40
        $region39: #{fpn_predictor.1} parent=31 // pred_region
          %216 = dma.done [#allocation5], 2048
        $region40: #{fpn_predictor.1} parent=31 // pred_fallthru
          _
        %s217 = sand.u32 %s28, 1
        %s218 = scalar_lea.sflag [#allocation3], %s217
        %s219 = sand.u32 %s28, 1
        %s220 = smul.addr %s219, 112
        %s221 = scalar_lea.vmem [#allocation2], %s220
        %p222 = pneg %p41
        %p223 = pneg %p38
        %p224 = pneg %p62
        %p225 = pneg %p59
        %p226 = pneg %p83
        %p227 = pneg %p80
        %p228 = pneg %p109
        %p229 = pneg %p106
        %s230 = sand.u32 %s96, 1
        %s231 = sand.u32 %s96, 1
        %s232 = smul.addr %s231, 112
        %s233 = scalar_lea.vmem [#allocation6], %s232
        %p234 = pneg %p135
        %p235 = pneg %p132
        %s236 = sand.u32 %s122, 1
        %s237 = sand.u32 %s122, 1
        %s238 = smul.addr %s237, 112
        %s239 = scalar_lea.vmem [#allocation7], %s238
        %s240 = smul.u32 14, %s20
        %s241 = ssub.s32 25, %s240
        %p242 = scmp.lt.s32.totalorder %s241, 14
        %s243 = scalar_select %p242, %s241, 14
        %s244 = smul.u32 128, %s243
        %s245 = smul.u32 14, %s20
        %s246 = ssub.s32 25, %s245
        %p247 = scmp.lt.s32.totalorder %s246, 14
        %s248 = scalar_select %p247, %s246, 14
        %s249 = smul.u32 128, %s248
        %s250 = smul.u32 14, %s20
        %s251 = ssub.s32 25, %s250
        %p252 = scmp.lt.s32.totalorder %s251, 14
        %s253 = scalar_select %p252, %s251, 14
        %s254 = smul.u32 128, %s253
        %v256 = vld [vmem:[%s208] sm:$0xff]
        %v257 = vld [vmem:[%s208 + $0x8] sm:$0xff]
        %v258 = vld [vmem:[%s208 + $0x10] sm:$0xff]
        %v259 = vld [vmem:[%s208 + $0x18] sm:$0xff]
        %v260 = vld [vmem:[%s208 + $0x20] sm:$0xff]
        %v261 = vld [vmem:[%s208 + $0x28] sm:$0xff]
        %v262 = vld [vmem:[%s208 + $0x30] sm:$0xff]
        %v263 = vld [vmem:[%s208 + $0x38] sm:$0xff]
        %v264 = vld [vmem:[%s208 + $0x40] sm:$0xff]
        %v265 = vld [vmem:[%s208 + $0x48] sm:$0xff]
        %v266 = vld [vmem:[%s208 + $0x50] sm:$0xff]
        %v267 = vld [vmem:[%s208 + $0x58] sm:$0xff]
        %v268 = vld [vmem:[%s208 + $0x60] sm:$0xff]
        %v269 = vld [vmem:[%s208 + $0x68] sm:$0xff]
        %v270 = vpack.c.bf16 %v257, %v256
        %v271 = vpack.c.bf16 %v259, %v258
        %v272 = vpack.c.bf16 %v261, %v260
        %v273 = vpack.c.bf16 %v263, %v262
        %v274 = vpack.c.bf16 %v265, %v264
        %v275 = vpack.c.bf16 %v267, %v266
        %v276 = vpack.c.bf16 %v269, %v268
        %v277 = vld [vmem:[#allocation4] sm:$0xff]
        %v278 = vld [vmem:[#allocation4 + $0x8] sm:$0xff]
        %v279 = vld [vmem:[#allocation4 + $0x10] sm:$0xff]
        %v280 = vld [vmem:[#allocation4 + $0x18] sm:$0xff]
        %v281 = vld [vmem:[#allocation4 + $0x20] sm:$0xff]
        %v282 = vld [vmem:[#allocation4 + $0x28] sm:$0xff]
        %v283 = vld [vmem:[#allocation4 + $0x30] sm:$0xff]
        %v284 = vld [vmem:[#allocation4 + $0x38] sm:$0xff]
        %v285 = vld [vmem:[#allocation4 + $0x40] sm:$0xff]
        %v286 = vld [vmem:[#allocation4 + $0x48] sm:$0xff]
        %v287 = vld [vmem:[#allocation4 + $0x50] sm:$0xff]
        %v288 = vld [vmem:[#allocation4 + $0x58] sm:$0xff]
        %v289 = vld [vmem:[#allocation4 + $0x60] sm:$0xff]
        %v290 = vld [vmem:[#allocation4 + $0x68] sm:$0xff]
        %v291 = vld [vmem:[#allocation4 + $0x70] sm:$0xff]
        %v292 = vld [vmem:[#allocation4 + $0x78] sm:$0xff]
        %v293 = vld [vmem:[%s2] sm:$0x3]
        %v295 = vlaneseq
        %v296 = vshrl.u32 %v295, 7
        %v297 = vsub.s32 0, %v296
        %v298 = vrot.slane %v293, %v297
        %v299 = vlaneseq
        %v300 = vshrl.u32 %v299, 7
        %v301 = vsub.s32 1, %v300
        %v302 = vrot.slane %v293, %v301
        %v321 = vunpack.c.l.b16 %v277
        %v322 = vunpack.c.h.b16 %v277
        %v323 = vunpack.c.l.b16 %v278
        %v324 = vunpack.c.h.b16 %v278
        %v325 = vunpack.c.l.b16 %v279
        %v326 = vunpack.c.h.b16 %v279
        %v327 = vunpack.c.l.b16 %v280
        %v328 = vunpack.c.h.b16 %v280
        %v329 = vunpack.c.l.b16 %v281
        %v330 = vunpack.c.h.b16 %v281
        %v331 = vunpack.c.l.b16 %v282
        %v332 = vunpack.c.h.b16 %v282
        %v333 = vunpack.c.l.b16 %v283
        %v334 = vunpack.c.h.b16 %v283
        %v335 = vunpack.c.l.b16 %v284
        %v336 = vunpack.c.h.b16 %v284
        %v337 = vunpack.c.l.b16 %v285
        %v338 = vunpack.c.h.b16 %v285
        %v339 = vunpack.c.l.b16 %v286
        %v340 = vunpack.c.h.b16 %v286
        %v341 = vunpack.c.l.b16 %v287
        %v342 = vunpack.c.h.b16 %v287
        %v343 = vunpack.c.l.b16 %v288
        %v344 = vunpack.c.h.b16 %v288
        %v345 = vunpack.c.l.b16 %v289
        %v346 = vunpack.c.h.b16 %v289
        %v347 = vunpack.c.l.b16 %v290
        %v348 = vunpack.c.h.b16 %v290
        %v349 = vunpack.c.l.b16 %v291
        %v350 = vunpack.c.h.b16 %v291
        %v351 = vunpack.c.l.b16 %v292
        %v352 = vunpack.c.h.b16 %v292
        %v353 = vpack.c.b16 %v323, %v321
        %v354 = vpack.c.b16 %v324, %v322
        %v355 = vpack.c.b16 %v327, %v325
        %v356 = vpack.c.b16 %v328, %v326
        %v357 = vpack.c.b16 %v331, %v329
        %v358 = vpack.c.b16 %v332, %v330
        %v359 = vpack.c.b16 %v335, %v333
        %v360 = vpack.c.b16 %v336, %v334
        %v361 = vpack.c.b16 %v339, %v337
        %v362 = vpack.c.b16 %v340, %v338
        %v363 = vpack.c.b16 %v343, %v341
        %v364 = vpack.c.b16 %v344, %v342
        %v365 = vpack.c.b16 %v347, %v345
        %v366 = vpack.c.b16 %v348, %v346
        %v367 = vpack.c.b16 %v351, %v349
        %v368 = vpack.c.b16 %v352, %v350
        %385 = vmatprep.subr.bf16.mxu0 %v354
        %386 = vmatpush1.bf16.msra.mxu0 %v353
        %387 = vmatprep.subr.bf16.mxu0 %v356
        %388 = vmatpush1.bf16.msra.mxu0 %v355
        %389 = vmatprep.subr.bf16.mxu0 %v358
        %390 = vmatpush1.bf16.msra.mxu0 %v357
        %391 = vmatprep.subr.bf16.mxu0 %v360
        %392 = vmatpush1.bf16.msra.mxu0 %v359
        %393 = vmatprep.subr.bf16.mxu0 %v362
        %394 = vmatpush1.bf16.msra.mxu0 %v361
        %395 = vmatprep.subr.bf16.mxu0 %v364
        %396 = vmatpush1.bf16.msra.mxu0 %v363
        %397 = vmatprep.subr.bf16.mxu0 %v366
        %398 = vmatpush1.bf16.msra.mxu0 %v365
        %399 = vmatprep.subr.bf16.mxu0 %v368
        %400 = vmatpush1.bf16.msra.mxu0 %v367
        %401 = vmatprep.subr.bf16.mxu0 0
        %402 = vmatpush1.bf16.msra.mxu0 0
        %403 = vmatprep.subr.bf16.mxu0 0
        %404 = vmatpush1.bf16.msra.mxu0 0
        %405 = vmatprep.subr.bf16.mxu0 0
        %406 = vmatpush1.bf16.msra.mxu0 0
        %407 = vmatprep.subr.bf16.mxu0 0
        %408 = vmatpush1.bf16.msra.mxu0 0
        %409 = vmatprep.subr.bf16.mxu0 0
        %410 = vmatpush1.bf16.msra.mxu0 0
        %411 = vmatprep.subr.bf16.mxu0 0
        %412 = vmatpush1.bf16.msra.mxu0 0
        %413 = vmatprep.subr.bf16.mxu0 0
        %414 = vmatpush1.bf16.msra.mxu0 0
        %415 = vmatprep.subr.bf16.mxu0 0
        %416 = vmatpush1.bf16.msra.mxu0 0
        %417 = vmatprep.mubr.bf16.mxu0 0
        %418 = vmatmul.mubr.bf16.gmra.mrb[0].mxu0 %v270
        %v419 = vpop.f32.mrb[0].mxu0
        %v420 = vadd.f32 %v298, %v419
        %v421 = vpop.f32.mrb[0].mxu0
        %v422 = vadd.f32 %v302, %v421
        %v423 = vpop.f32.mrb[0].mxu0
        %v424 = vadd.f32 %v298, %v423
        %v425 = vpop.f32.mrb[0].mxu0
        %v426 = vadd.f32 %v302, %v425
        %427 = vmatprep.mubr.bf16.mxu0 0
        %428 = vmatmul.mubr.bf16.gmra.mrb[0].mxu0 %v271
        %v429 = vpop.f32.mrb[0].mxu0
        %v430 = vadd.f32 %v298, %v429
        %v431 = vpop.f32.mrb[0].mxu0
        %v432 = vadd.f32 %v302, %v431
        %v433 = vpop.f32.mrb[0].mxu0
        %v434 = vadd.f32 %v298, %v433
        %v435 = vpop.f32.mrb[0].mxu0
        %v436 = vadd.f32 %v302, %v435
        %437 = vmatprep.mubr.bf16.mxu0 0
        %438 = vmatmul.mubr.bf16.gmra.mrb[0].mxu0 %v272
        %v439 = vpop.f32.mrb[0].mxu0
        %v440 = vadd.f32 %v298, %v439
        %v441 = vpop.f32.mrb[0].mxu0
        %v442 = vadd.f32 %v302, %v441
        %v443 = vpop.f32.mrb[0].mxu0
        %v444 = vadd.f32 %v298, %v443
        %v445 = vpop.f32.mrb[0].mxu0
        %v446 = vadd.f32 %v302, %v445
        %447 = vmatprep.mubr.bf16.mxu0 0
        %448 = vmatmul.mubr.bf16.gmra.mrb[0].mxu0 %v273
        %v449 = vpop.f32.mrb[0].mxu0
        %v450 = vadd.f32 %v298, %v449
        %v451 = vpop.f32.mrb[0].mxu0
        %v452 = vadd.f32 %v302, %v451
        %v453 = vpop.f32.mrb[0].mxu0
        %v454 = vadd.f32 %v298, %v453
        %v455 = vpop.f32.mrb[0].mxu0
        %v456 = vadd.f32 %v302, %v455
        %457 = vmatprep.mubr.bf16.mxu0 0
        %458 = vmatmul.mubr.bf16.gmra.mrb[0].mxu0 %v274
        %v459 = vpop.f32.mrb[0].mxu0
        %v460 = vadd.f32 %v298, %v459
        %v461 = vpop.f32.mrb[0].mxu0
        %v462 = vadd.f32 %v302, %v461
        %v463 = vpop.f32.mrb[0].mxu0
        %v464 = vadd.f32 %v298, %v463
        %v465 = vpop.f32.mrb[0].mxu0
        %v466 = vadd.f32 %v302, %v465
        %467 = vmatprep.mubr.bf16.mxu0 0
        %468 = vmatmul.mubr.bf16.gmra.mrb[0].mxu0 %v275
        %v469 = vpop.f32.mrb[0].mxu0
        %v470 = vadd.f32 %v298, %v469
        %v471 = vpop.f32.mrb[0].mxu0
        %v472 = vadd.f32 %v302, %v471
        %v473 = vpop.f32.mrb[0].mxu0
        %v474 = vadd.f32 %v298, %v473
        %v475 = vpop.f32.mrb[0].mxu0
        %v476 = vadd.f32 %v302, %v475
        %477 = vmatprep.mubr.bf16.mxu0 0
        %478 = vmatmul.mubr.bf16.gmra.mrb[0].mxu0 %v276
        %v479 = vpop.f32.mrb[0].mxu0
        %v480 = vadd.f32 %v298, %v479
        %v481 = vpop.f32.mrb[0].mxu0
        %v482 = vadd.f32 %v302, %v481
        %v483 = vpop.f32.mrb[0].mxu0
        %v484 = vadd.f32 %v298, %v483
        %v485 = vpop.f32.mrb[0].mxu0
        %v486 = vadd.f32 %v302, %v485
        %487 = vdwg.mxu0
        %488 = vst [vmem:[%s233] sm:$0xff] %v420
        %489 = vst [vmem:[%s233 + $0x8] sm:$0xff] %v424
        %490 = vst [vmem:[%s233 + $0x10] sm:$0xff] %v430
        %491 = vst [vmem:[%s233 + $0x18] sm:$0xff] %v434
        %492 = vst [vmem:[%s233 + $0x20] sm:$0xff] %v440
        %493 = vst [vmem:[%s233 + $0x28] sm:$0xff] %v444
        %494 = vst [vmem:[%s233 + $0x30] sm:$0xff] %v450
        %495 = vst [vmem:[%s233 + $0x38] sm:$0xff] %v454
        %496 = vst [vmem:[%s233 + $0x40] sm:$0xff] %v460
        %497 = vst [vmem:[%s233 + $0x48] sm:$0xff] %v464
        %498 = vst [vmem:[%s233 + $0x50] sm:$0xff] %v470
        %499 = vst [vmem:[%s233 + $0x58] sm:$0xff] %v474
        %500 = vst [vmem:[%s233 + $0x60] sm:$0xff] %v480
        %501 = vst [vmem:[%s233 + $0x68] sm:$0xff] %v484
        %502 = vst [vmem:[%s239] sm:$0xff] %v422
        %503 = vst [vmem:[%s239 + $0x8] sm:$0xff] %v426
        %504 = vst [vmem:[%s239 + $0x10] sm:$0xff] %v432
        %505 = vst [vmem:[%s239 + $0x18] sm:$0xff] %v436
        %506 = vst [vmem:[%s239 + $0x20] sm:$0xff] %v442
        %507 = vst [vmem:[%s239 + $0x28] sm:$0xff] %v446
        %508 = vst [vmem:[%s239 + $0x30] sm:$0xff] %v452
        %509 = vst [vmem:[%s239 + $0x38] sm:$0xff] %v456
        %510 = vst [vmem:[%s239 + $0x40] sm:$0xff] %v462
        %511 = vst [vmem:[%s239 + $0x48] sm:$0xff] %v466
        %512 = vst [vmem:[%s239 + $0x50] sm:$0xff] %v472
        %513 = vst [vmem:[%s239 + $0x58] sm:$0xff] %v476
        %514 = vst [vmem:[%s239 + $0x60] sm:$0xff] %v482
        %515 = vst [vmem:[%s239 + $0x68] sm:$0xff] %v486
        %s516 = sand.u32 %s96, 1
        %s517 = sand.u32 %s96, 1
        %s518 = smul.addr %s517, 112
        %s519 = scalar_lea.vmem [#allocation6], %s518
        %s520 = sand.u32 %s122, 1
        %s521 = sand.u32 %s122, 1
        %s522 = smul.addr %s521, 112
        %s523 = scalar_lea.vmem [#allocation7], %s522
        // Predicated region
        $region41: #{fpn_predictor.1} parent=31 // pred_check
          %p524 = pneg %p106
        $region42: #{fpn_predictor.1} parent=31 // pred_check_branch
          %526 = sbr.rel (%p524) target = $region44
        $region43: #{fpn_predictor.1} parent=31 // pred_region
          %s527 = smul.u32 14, %s20
          %s528 = ssub.s32 25, %s527
          %p529 = scmp.lt.s32.totalorder %s528, 14
          %s530 = scalar_select %p529, %s528, 14
          %s531 = smul.u32 128, %s530
          %p532 = scmp.ne.s32.totalorder 0, %s531
          %s533 = smul.addr %s527, 8
          %s534 = scalar_lea.vmem %s3, %s533
          // Predicated region
          $region45: #{fpn_predictor.1} parent=43 // pred_check
            %p535 = pneg %p532
          $region46: #{fpn_predictor.1} parent=43 // pred_check_branch
            %537 = sbr.rel (%p535) target = $region48
          $region47: #{fpn_predictor.1} parent=43 // pred_region
            // Predicated region
            $region49: #{fpn_predictor.1} parent=47 // pred_check
              _
            $region50: #{fpn_predictor.1} parent=47 // pred_check_branch
              %539 = sbr.rel (0) target = $region52
            $region51: #{fpn_predictor.1} parent=47 // pred_region
              // Predicated region
              $region71: #{fpn_predictor.1} parent=51 // pred_check
                _
              $region72: #{fpn_predictor.1} parent=51 // pred_check_branch
                %615 = sbr.rel (0) target = $region74
              $region73: #{fpn_predictor.1} parent=51 // pred_region
                %s616 = sdiv.u32.pop %s530, 14
                %s617 = srem.u32.pop %s530, 14
                // While loop
                $region75: #{fpn_predictor.1} parent=73 // loop_pre_header
                  _
                $region76: #{fpn_predictor.1} parent=73 // loop_header
                  %s619 = sphi 0, %s621
                  %p620 = scmp.ge.s32.totalorder %s619, %s616
                  %s624 = sphi 0, %s657
                  %s625 = sphi %s519, %s660
                  %s626 = sphi %s534, %s661
                $region77: #{fpn_predictor.1} parent=73 // loop_header_branch
                  %623 = sbr.rel (%p620) target = $region81
                $region78: #{fpn_predictor.1} parent=73 // loop_body
                  %v627 = vld [vmem:[%s625] sm:$0xff]
                  %628 = vst [vmem:[%s626] sm:$0xff] %v627
                  %v629 = vld [vmem:[%s625 + $0x8] sm:$0xff]
                  %630 = vst [vmem:[%s626 + $0x8] sm:$0xff] %v629
                  %v631 = vld [vmem:[%s625 + $0x10] sm:$0xff]
                  %632 = vst [vmem:[%s626 + $0x10] sm:$0xff] %v631
                  %v633 = vld [vmem:[%s625 + $0x18] sm:$0xff]
                  %634 = vst [vmem:[%s626 + $0x18] sm:$0xff] %v633
                  %v635 = vld [vmem:[%s625 + $0x20] sm:$0xff]
                  %636 = vst [vmem:[%s626 + $0x20] sm:$0xff] %v635
                  %v637 = vld [vmem:[%s625 + $0x28] sm:$0xff]
                  %638 = vst [vmem:[%s626 + $0x28] sm:$0xff] %v637
                  %v639 = vld [vmem:[%s625 + $0x30] sm:$0xff]
                  %640 = vst [vmem:[%s626 + $0x30] sm:$0xff] %v639
                  %v641 = vld [vmem:[%s625 + $0x38] sm:$0xff]
                  %642 = vst [vmem:[%s626 + $0x38] sm:$0xff] %v641
                  %v643 = vld [vmem:[%s625 + $0x40] sm:$0xff]
                  %644 = vst [vmem:[%s626 + $0x40] sm:$0xff] %v643
                  %v645 = vld [vmem:[%s625 + $0x48] sm:$0xff]
                  %646 = vst [vmem:[%s626 + $0x48] sm:$0xff] %v645
                  %v647 = vld [vmem:[%s625 + $0x50] sm:$0xff]
                  %648 = vst [vmem:[%s626 + $0x50] sm:$0xff] %v647
                  %v649 = vld [vmem:[%s625 + $0x58] sm:$0xff]
                  %650 = vst [vmem:[%s626 + $0x58] sm:$0xff] %v649
                  %v651 = vld [vmem:[%s625 + $0x60] sm:$0xff]
                  %652 = vst [vmem:[%s626 + $0x60] sm:$0xff] %v651
                  %v653 = vld [vmem:[%s625 + $0x68] sm:$0xff]
                  %654 = vst [vmem:[%s626 + $0x68] sm:$0xff] %v653
                  %s655 = sadd.s32 1, %s624
                  %p656 = scmp.ge.s32.totalorder %s655, %s616
                  %s657 = scalar_select %p656, 0, %s655
                  %s658 = smul.u32 %s657, 112
                  %s659 = smul.u32 %s657, 112
                  %s660 = scalar_lea.vmem %s519, %s658 [#allocation6]
                  %s661 = scalar_lea.vmem %s534, %s659
                $region79: #{fpn_predictor.1} parent=73 // loop_footer
                  %s621 = sadd.s32 %s619, 1
                $region80: #{fpn_predictor.1} parent=73 // loop_footer_branch
                  %618 = sbr.rel target = $region76
                $region81: #{fpn_predictor.1} parent=73 // loop_exit
                  _
                %s662 = sdiv.u32.pop %s530, 14
                %s663 = srem.u32.pop %s530, 14
                %s664 = smul.u32 %s662, 14
                %s665 = smul.u32 8, %s664
                %s666 = scalar_lea.vmem %s519, %s665 [#allocation6]
                %s667 = smul.u32 8, %s664
                %s668 = scalar_lea.vmem %s534, %s667
                // While loop
                $region82: #{fpn_predictor.1} parent=73 // loop_pre_header
                  _
                $region83: #{fpn_predictor.1} parent=73 // loop_header
                  %s670 = sphi 0, %s672
                  %p671 = scmp.ge.s32.totalorder %s670, %s663
                  %s675 = sphi 0, %s682
                  %s676 = sphi %s666, %s685
                  %s677 = sphi %s668, %s686
                $region84: #{fpn_predictor.1} parent=73 // loop_header_branch
                  %674 = sbr.rel (%p671) target = $region88
                $region85: #{fpn_predictor.1} parent=73 // loop_body
                  %v678 = vld [vmem:[%s676] sm:$0xff]
                  %679 = vst [vmem:[%s677] sm:$0xff] %v678
                  %s680 = sadd.s32 1, %s675
                  %p681 = scmp.ge.s32.totalorder %s680, %s663
                  %s682 = scalar_select %p681, 0, %s680
                  %s683 = smul.u32 %s682, 8
                  %s684 = smul.u32 %s682, 8
                  %s685 = scalar_lea.vmem %s666, %s683 [#allocation6]
                  %s686 = scalar_lea.vmem %s668, %s684
                $region86: #{fpn_predictor.1} parent=73 // loop_footer
                  %s672 = sadd.s32 %s670, 1
                $region87: #{fpn_predictor.1} parent=73 // loop_footer_branch
                  %669 = sbr.rel target = $region83
                $region88: #{fpn_predictor.1} parent=73 // loop_exit
                  _
              $region74: #{fpn_predictor.1} parent=51 // pred_fallthru
                _
              // Predicated region
              $region89: #{fpn_predictor.1} parent=51 // pred_check
                _
              $region90: #{fpn_predictor.1} parent=51 // pred_check_branch
                %688 = sbr.rel target = $region92
              $region91: #{fpn_predictor.1} parent=51 // pred_region
                _
              $region92: #{fpn_predictor.1} parent=51 // pred_fallthru
                _
            $region52: #{fpn_predictor.1} parent=47 // pred_fallthru
              _
            // Predicated region
            $region53: #{fpn_predictor.1} parent=47 // pred_check
              _
            $region54: #{fpn_predictor.1} parent=47 // pred_check_branch
              %541 = sbr.rel target = $region56
            $region55: #{fpn_predictor.1} parent=47 // pred_region
              %s543 = sdiv.u32.pop %s530, 14
              %s544 = srem.u32.pop %s530, 14
              // While loop
              $region57: #{fpn_predictor.1} parent=55 // loop_pre_header
                _
              $region58: #{fpn_predictor.1} parent=55 // loop_header
                %s546 = sphi 0, %s548
                %p547 = scmp.ge.s32.totalorder %s546, %s543
                %s551 = sphi 0, %s584
                %s552 = sphi %s519, %s587
                %s553 = sphi %s534, %s588
              $region59: #{fpn_predictor.1} parent=55 // loop_header_branch
                %550 = sbr.rel (%p547) target = $region63
              $region60: #{fpn_predictor.1} parent=55 // loop_body
                %v554 = vld [vmem:[%s552] sm:$0xff]
                %555 = vst [vmem:[%s553] sm:$0xff] %v554
                %v556 = vld [vmem:[%s552 + $0x8] sm:$0xff]
                %557 = vst [vmem:[%s553 + $0x8] sm:$0xff] %v556
                %v558 = vld [vmem:[%s552 + $0x10] sm:$0xff]
                %559 = vst [vmem:[%s553 + $0x10] sm:$0xff] %v558
                %v560 = vld [vmem:[%s552 + $0x18] sm:$0xff]
                %561 = vst [vmem:[%s553 + $0x18] sm:$0xff] %v560
                %v562 = vld [vmem:[%s552 + $0x20] sm:$0xff]
                %563 = vst [vmem:[%s553 + $0x20] sm:$0xff] %v562
                %v564 = vld [vmem:[%s552 + $0x28] sm:$0xff]
                %565 = vst [vmem:[%s553 + $0x28] sm:$0xff] %v564
                %v566 = vld [vmem:[%s552 + $0x30] sm:$0xff]
                %567 = vst [vmem:[%s553 + $0x30] sm:$0xff] %v566
                %v568 = vld [vmem:[%s552 + $0x38] sm:$0xff]
                %569 = vst [vmem:[%s553 + $0x38] sm:$0xff] %v568
                %v570 = vld [vmem:[%s552 + $0x40] sm:$0xff]
                %571 = vst [vmem:[%s553 + $0x40] sm:$0xff] %v570
                %v572 = vld [vmem:[%s552 + $0x48] sm:$0xff]
                %573 = vst [vmem:[%s553 + $0x48] sm:$0xff] %v572
                %v574 = vld [vmem:[%s552 + $0x50] sm:$0xff]
                %575 = vst [vmem:[%s553 + $0x50] sm:$0xff] %v574
                %v576 = vld [vmem:[%s552 + $0x58] sm:$0xff]
                %577 = vst [vmem:[%s553 + $0x58] sm:$0xff] %v576
                %v578 = vld [vmem:[%s552 + $0x60] sm:$0xff]
                %579 = vst [vmem:[%s553 + $0x60] sm:$0xff] %v578
                %v580 = vld [vmem:[%s552 + $0x68] sm:$0xff]
                %581 = vst [vmem:[%s553 + $0x68] sm:$0xff] %v580
                %s582 = sadd.s32 1, %s551
                %p583 = scmp.ge.s32.totalorder %s582, %s543
                %s584 = scalar_select %p583, 0, %s582
                %s585 = smul.u32 %s584, 112
                %s586 = smul.u32 %s584, 112
                %s587 = scalar_lea.vmem %s519, %s585 [#allocation6]
                %s588 = scalar_lea.vmem %s534, %s586
              $region61: #{fpn_predictor.1} parent=55 // loop_footer
                %s548 = sadd.s32 %s546, 1
              $region62: #{fpn_predictor.1} parent=55 // loop_footer_branch
                %545 = sbr.rel target = $region58
              $region63: #{fpn_predictor.1} parent=55 // loop_exit
                _
              %s589 = sdiv.u32.pop %s530, 14
              %s590 = srem.u32.pop %s530, 14
              %s591 = smul.u32 %s589, 14
              %s592 = smul.u32 8, %s591
              %s593 = scalar_lea.vmem %s519, %s592 [#allocation6]
              %s594 = smul.u32 8, %s591
              %s595 = scalar_lea.vmem %s534, %s594
              // While loop
              $region64: #{fpn_predictor.1} parent=55 // loop_pre_header
                _
              $region65: #{fpn_predictor.1} parent=55 // loop_header
                %s597 = sphi 0, %s599
                %p598 = scmp.ge.s32.totalorder %s597, %s590
                %s602 = sphi 0, %s609
                %s603 = sphi %s593, %s612
                %s604 = sphi %s595, %s613
              $region66: #{fpn_predictor.1} parent=55 // loop_header_branch
                %601 = sbr.rel (%p598) target = $region70
              $region67: #{fpn_predictor.1} parent=55 // loop_body
                %v605 = vld [vmem:[%s603] sm:$0xff]
                %606 = vst [vmem:[%s604] sm:$0xff] %v605
                %s607 = sadd.s32 1, %s602
                %p608 = scmp.ge.s32.totalorder %s607, %s590
                %s609 = scalar_select %p608, 0, %s607
                %s610 = smul.u32 %s609, 8
                %s611 = smul.u32 %s609, 8
                %s612 = scalar_lea.vmem %s593, %s610 [#allocation6]
                %s613 = scalar_lea.vmem %s595, %s611
              $region68: #{fpn_predictor.1} parent=55 // loop_footer
                %s599 = sadd.s32 %s597, 1
              $region69: #{fpn_predictor.1} parent=55 // loop_footer_branch
                %596 = sbr.rel target = $region65
              $region70: #{fpn_predictor.1} parent=55 // loop_exit
                _
            $region56: #{fpn_predictor.1} parent=47 // pred_fallthru
              _
          $region48: #{fpn_predictor.1} parent=43 // pred_fallthru
            _
          %689 = vnop
        $region44: #{fpn_predictor.1} parent=31 // pred_fallthru
          _
        // Predicated region
        $region93: #{fpn_predictor.1} parent=31 // pred_check
          %p690 = pneg %p132
        $region94: #{fpn_predictor.1} parent=31 // pred_check_branch
          %692 = sbr.rel (%p690) target = $region96
        $region95: #{fpn_predictor.1} parent=31 // pred_region
          %s693 = smul.u32 14, %s20
          %s694 = ssub.s32 25, %s693
          %p695 = scmp.lt.s32.totalorder %s694, 14
          %s696 = scalar_select %p695, %s694, 14
          %s697 = smul.u32 128, %s696
          %p698 = scmp.ne.s32.totalorder 0, %s697
          %s699 = smul.addr %s693, 8
          %s700 = scalar_lea.vmem %s4, %s699
          // Predicated region
          $region97: #{fpn_predictor.1} parent=95 // pred_check
            %p701 = pneg %p698
          $region98: #{fpn_predictor.1} parent=95 // pred_check_branch
            %703 = sbr.rel (%p701) target = $region100
          $region99: #{fpn_predictor.1} parent=95 // pred_region
            // Predicated region
            $region101: #{fpn_predictor.1} parent=99 // pred_check
              _
            $region102: #{fpn_predictor.1} parent=99 // pred_check_branch
              %705 = sbr.rel (0) target = $region104
            $region103: #{fpn_predictor.1} parent=99 // pred_region
              // Predicated region
              $region123: #{fpn_predictor.1} parent=103 // pred_check
                _
              $region124: #{fpn_predictor.1} parent=103 // pred_check_branch
                %781 = sbr.rel (0) target = $region126
              $region125: #{fpn_predictor.1} parent=103 // pred_region
                %s782 = sdiv.u32.pop %s696, 14
                %s783 = srem.u32.pop %s696, 14
                // While loop
                $region127: #{fpn_predictor.1} parent=125 // loop_pre_header
                  _
                $region128: #{fpn_predictor.1} parent=125 // loop_header
                  %s785 = sphi 0, %s787
                  %p786 = scmp.ge.s32.totalorder %s785, %s782
                  %s790 = sphi 0, %s823
                  %s791 = sphi %s523, %s826
                  %s792 = sphi %s700, %s827
                $region129: #{fpn_predictor.1} parent=125 // loop_header_branch
                  %789 = sbr.rel (%p786) target = $region133
                $region130: #{fpn_predictor.1} parent=125 // loop_body
                  %v793 = vld [vmem:[%s791] sm:$0xff]
                  %794 = vst [vmem:[%s792] sm:$0xff] %v793
                  %v795 = vld [vmem:[%s791 + $0x8] sm:$0xff]
                  %796 = vst [vmem:[%s792 + $0x8] sm:$0xff] %v795
                  %v797 = vld [vmem:[%s791 + $0x10] sm:$0xff]
                  %798 = vst [vmem:[%s792 + $0x10] sm:$0xff] %v797
                  %v799 = vld [vmem:[%s791 + $0x18] sm:$0xff]
                  %800 = vst [vmem:[%s792 + $0x18] sm:$0xff] %v799
                  %v801 = vld [vmem:[%s791 + $0x20] sm:$0xff]
                  %802 = vst [vmem:[%s792 + $0x20] sm:$0xff] %v801
                  %v803 = vld [vmem:[%s791 + $0x28] sm:$0xff]
                  %804 = vst [vmem:[%s792 + $0x28] sm:$0xff] %v803
                  %v805 = vld [vmem:[%s791 + $0x30] sm:$0xff]
                  %806 = vst [vmem:[%s792 + $0x30] sm:$0xff] %v805
                  %v807 = vld [vmem:[%s791 + $0x38] sm:$0xff]
                  %808 = vst [vmem:[%s792 + $0x38] sm:$0xff] %v807
                  %v809 = vld [vmem:[%s791 + $0x40] sm:$0xff]
                  %810 = vst [vmem:[%s792 + $0x40] sm:$0xff] %v809
                  %v811 = vld [vmem:[%s791 + $0x48] sm:$0xff]
                  %812 = vst [vmem:[%s792 + $0x48] sm:$0xff] %v811
                  %v813 = vld [vmem:[%s791 + $0x50] sm:$0xff]
                  %814 = vst [vmem:[%s792 + $0x50] sm:$0xff] %v813
                  %v815 = vld [vmem:[%s791 + $0x58] sm:$0xff]
                  %816 = vst [vmem:[%s792 + $0x58] sm:$0xff] %v815
                  %v817 = vld [vmem:[%s791 + $0x60] sm:$0xff]
                  %818 = vst [vmem:[%s792 + $0x60] sm:$0xff] %v817
                  %v819 = vld [vmem:[%s791 + $0x68] sm:$0xff]
                  %820 = vst [vmem:[%s792 + $0x68] sm:$0xff] %v819
                  %s821 = sadd.s32 1, %s790
                  %p822 = scmp.ge.s32.totalorder %s821, %s782
                  %s823 = scalar_select %p822, 0, %s821
                  %s824 = smul.u32 %s823, 112
                  %s825 = smul.u32 %s823, 112
                  %s826 = scalar_lea.vmem %s523, %s824 [#allocation7]
                  %s827 = scalar_lea.vmem %s700, %s825
                $region131: #{fpn_predictor.1} parent=125 // loop_footer
                  %s787 = sadd.s32 %s785, 1
                $region132: #{fpn_predictor.1} parent=125 // loop_footer_branch
                  %784 = sbr.rel target = $region128
                $region133: #{fpn_predictor.1} parent=125 // loop_exit
                  _
                %s828 = sdiv.u32.pop %s696, 14
                %s829 = srem.u32.pop %s696, 14
                %s830 = smul.u32 %s828, 14
                %s831 = smul.u32 8, %s830
                %s832 = scalar_lea.vmem %s523, %s831 [#allocation7]
                %s833 = smul.u32 8, %s830
                %s834 = scalar_lea.vmem %s700, %s833
                // While loop
                $region134: #{fpn_predictor.1} parent=125 // loop_pre_header
                  _
                $region135: #{fpn_predictor.1} parent=125 // loop_header
                  %s836 = sphi 0, %s838
                  %p837 = scmp.ge.s32.totalorder %s836, %s829
                  %s841 = sphi 0, %s848
                  %s842 = sphi %s832, %s851
                  %s843 = sphi %s834, %s852
                $region136: #{fpn_predictor.1} parent=125 // loop_header_branch
                  %840 = sbr.rel (%p837) target = $region140
                $region137: #{fpn_predictor.1} parent=125 // loop_body
                  %v844 = vld [vmem:[%s842] sm:$0xff]
                  %845 = vst [vmem:[%s843] sm:$0xff] %v844
                  %s846 = sadd.s32 1, %s841
                  %p847 = scmp.ge.s32.totalorder %s846, %s829
                  %s848 = scalar_select %p847, 0, %s846
                  %s849 = smul.u32 %s848, 8
                  %s850 = smul.u32 %s848, 8
                  %s851 = scalar_lea.vmem %s832, %s849 [#allocation7]
                  %s852 = scalar_lea.vmem %s834, %s850
                $region138: #{fpn_predictor.1} parent=125 // loop_footer
                  %s838 = sadd.s32 %s836, 1
                $region139: #{fpn_predictor.1} parent=125 // loop_footer_branch
                  %835 = sbr.rel target = $region135
                $region140: #{fpn_predictor.1} parent=125 // loop_exit
                  _
              $region126: #{fpn_predictor.1} parent=103 // pred_fallthru
                _
              // Predicated region
              $region141: #{fpn_predictor.1} parent=103 // pred_check
                _
              $region142: #{fpn_predictor.1} parent=103 // pred_check_branch
                %854 = sbr.rel target = $region144
              $region143: #{fpn_predictor.1} parent=103 // pred_region
                _
              $region144: #{fpn_predictor.1} parent=103 // pred_fallthru
                _
            $region104: #{fpn_predictor.1} parent=99 // pred_fallthru
              _
            // Predicated region
            $region105: #{fpn_predictor.1} parent=99 // pred_check
              _
            $region106: #{fpn_predictor.1} parent=99 // pred_check_branch
              %707 = sbr.rel target = $region108
            $region107: #{fpn_predictor.1} parent=99 // pred_region
              %s709 = sdiv.u32.pop %s696, 14
              %s710 = srem.u32.pop %s696, 14
              // While loop
              $region109: #{fpn_predictor.1} parent=107 // loop_pre_header
                _
              $region110: #{fpn_predictor.1} parent=107 // loop_header
                %s712 = sphi 0, %s714
                %p713 = scmp.ge.s32.totalorder %s712, %s709
                %s717 = sphi 0, %s750
                %s718 = sphi %s523, %s753
                %s719 = sphi %s700, %s754
              $region111: #{fpn_predictor.1} parent=107 // loop_header_branch
                %716 = sbr.rel (%p713) target = $region115
              $region112: #{fpn_predictor.1} parent=107 // loop_body
                %v720 = vld [vmem:[%s718] sm:$0xff]
                %721 = vst [vmem:[%s719] sm:$0xff] %v720
                %v722 = vld [vmem:[%s718 + $0x8] sm:$0xff]
                %723 = vst [vmem:[%s719 + $0x8] sm:$0xff] %v722
                %v724 = vld [vmem:[%s718 + $0x10] sm:$0xff]
                %725 = vst [vmem:[%s719 + $0x10] sm:$0xff] %v724
                %v726 = vld [vmem:[%s718 + $0x18] sm:$0xff]
                %727 = vst [vmem:[%s719 + $0x18] sm:$0xff] %v726
                %v728 = vld [vmem:[%s718 + $0x20] sm:$0xff]
                %729 = vst [vmem:[%s719 + $0x20] sm:$0xff] %v728
                %v730 = vld [vmem:[%s718 + $0x28] sm:$0xff]
                %731 = vst [vmem:[%s719 + $0x28] sm:$0xff] %v730
                %v732 = vld [vmem:[%s718 + $0x30] sm:$0xff]
                %733 = vst [vmem:[%s719 + $0x30] sm:$0xff] %v732
                %v734 = vld [vmem:[%s718 + $0x38] sm:$0xff]
                %735 = vst [vmem:[%s719 + $0x38] sm:$0xff] %v734
                %v736 = vld [vmem:[%s718 + $0x40] sm:$0xff]
                %737 = vst [vmem:[%s719 + $0x40] sm:$0xff] %v736
                %v738 = vld [vmem:[%s718 + $0x48] sm:$0xff]
                %739 = vst [vmem:[%s719 + $0x48] sm:$0xff] %v738
                %v740 = vld [vmem:[%s718 + $0x50] sm:$0xff]
                %741 = vst [vmem:[%s719 + $0x50] sm:$0xff] %v740
                %v742 = vld [vmem:[%s718 + $0x58] sm:$0xff]
                %743 = vst [vmem:[%s719 + $0x58] sm:$0xff] %v742
                %v744 = vld [vmem:[%s718 + $0x60] sm:$0xff]
                %745 = vst [vmem:[%s719 + $0x60] sm:$0xff] %v744
                %v746 = vld [vmem:[%s718 + $0x68] sm:$0xff]
                %747 = vst [vmem:[%s719 + $0x68] sm:$0xff] %v746
                %s748 = sadd.s32 1, %s717
                %p749 = scmp.ge.s32.totalorder %s748, %s709
                %s750 = scalar_select %p749, 0, %s748
                %s751 = smul.u32 %s750, 112
                %s752 = smul.u32 %s750, 112
                %s753 = scalar_lea.vmem %s523, %s751 [#allocation7]
                %s754 = scalar_lea.vmem %s700, %s752
              $region113: #{fpn_predictor.1} parent=107 // loop_footer
                %s714 = sadd.s32 %s712, 1
              $region114: #{fpn_predictor.1} parent=107 // loop_footer_branch
                %711 = sbr.rel target = $region110
              $region115: #{fpn_predictor.1} parent=107 // loop_exit
                _
              %s755 = sdiv.u32.pop %s696, 14
              %s756 = srem.u32.pop %s696, 14
              %s757 = smul.u32 %s755, 14
              %s758 = smul.u32 8, %s757
              %s759 = scalar_lea.vmem %s523, %s758 [#allocation7]
              %s760 = smul.u32 8, %s757
              %s761 = scalar_lea.vmem %s700, %s760
              // While loop
              $region116: #{fpn_predictor.1} parent=107 // loop_pre_header
                _
              $region117: #{fpn_predictor.1} parent=107 // loop_header
                %s763 = sphi 0, %s765
                %p764 = scmp.ge.s32.totalorder %s763, %s756
                %s768 = sphi 0, %s775
                %s769 = sphi %s759, %s778
                %s770 = sphi %s761, %s779
              $region118: #{fpn_predictor.1} parent=107 // loop_header_branch
                %767 = sbr.rel (%p764) target = $region122
              $region119: #{fpn_predictor.1} parent=107 // loop_body
                %v771 = vld [vmem:[%s769] sm:$0xff]
                %772 = vst [vmem:[%s770] sm:$0xff] %v771
                %s773 = sadd.s32 1, %s768
                %p774 = scmp.ge.s32.totalorder %s773, %s756
                %s775 = scalar_select %p774, 0, %s773
                %s776 = smul.u32 %s775, 8
                %s777 = smul.u32 %s775, 8
                %s778 = scalar_lea.vmem %s759, %s776 [#allocation7]
                %s779 = scalar_lea.vmem %s761, %s777
              $region120: #{fpn_predictor.1} parent=107 // loop_footer
                %s765 = sadd.s32 %s763, 1
              $region121: #{fpn_predictor.1} parent=107 // loop_footer_branch
                %762 = sbr.rel target = $region117
              $region122: #{fpn_predictor.1} parent=107 // loop_exit
                _
            $region108: #{fpn_predictor.1} parent=99 // pred_fallthru
              _
          $region100: #{fpn_predictor.1} parent=95 // pred_fallthru
            _
          %855 = vnop
        $region96: #{fpn_predictor.1} parent=31 // pred_fallthru
          _
      $region32: #{fpn_predictor.1} parent=5 // pred_fallthru
        _
      %p856 = scmp.le.s32.totalorder 2, %s15
      // Predicated region
      $region145: #{fpn_predictor.1} parent=5 // pred_check
        %p857 = pneg %p856
      $region146: #{fpn_predictor.1} parent=5 // pred_check_branch
        %859 = sbr.rel (%p857) target = $region148
      $region147: #{fpn_predictor.1} parent=5 // pred_region
        %s860 = ssub.s32 %s15, 2
        // Predicated region
        $region149: #{fpn_predictor.1} parent=147 // pred_check
          %p861 = pneg %p112
        $region150: #{fpn_predictor.1} parent=147 // pred_check_branch
          %863 = sbr.rel (%p861) target = $region152
        $region151: #{fpn_predictor.1} parent=147 // pred_region
          %s864 = sand.u32 %s97, 1
          %s865 = sand.u32 %s97, 1
          %s866 = smul.addr %s865, 112
          %s867 = scalar_lea.vmem [#allocation6], %s866
        $region152: #{fpn_predictor.1} parent=147 // pred_fallthru
          _
        // Predicated region
        $region153: #{fpn_predictor.1} parent=147 // pred_check
          %p868 = pneg %p138
        $region154: #{fpn_predictor.1} parent=147 // pred_check_branch
          %870 = sbr.rel (%p868) target = $region156
        $region155: #{fpn_predictor.1} parent=147 // pred_region
          %s871 = sand.u32 %s123, 1
          %s872 = sand.u32 %s123, 1
          %s873 = smul.addr %s872, 112
          %s874 = scalar_lea.vmem [#allocation7], %s873
        $region156: #{fpn_predictor.1} parent=147 // pred_fallthru
          _
      $region148: #{fpn_predictor.1} parent=5 // pred_fallthru
        _
    $region6: #{fpn_predictor.1} parent=1 // loop_footer
      %s19 = sadd.s32 1, %s15
    $region7: #{fpn_predictor.1} parent=1 // loop_footer_branch
      %14 = sbr.rel target = $region3
    $region8: #{fpn_predictor.1} parent=1 // loop_exit
      _
    %875 = vsyncpa [#allocation3], 1
    %s876 = scalar_lea.sflag [#allocation3], 1
    %877 = vsyncpa %s876, 1
    %878 = vsyncpa [#allocation5], 1

</llo_original>
